<compile_context>
chip_gen: v7x
topology: tpu7x:2x2x1
jax: 0.10.0
libtpu: 0.0.40
codegen_flags: <defaults>
</compile_context>

<pallas_src>
import functools

import jax
import jax.numpy as jnp
from jax import lax
from jax.experimental import pallas as pl
from jax.experimental.pallas import tpu as pltpu

NUM_ELEMENTS = 118 + 1  # embedding table rows (119), per the module


def _round_up(x, m):
    return (x + m - 1) // m * m


def _scale_shift_kernel_f1(x_ref, s_ref, t_ref, out_ref):
    """F == 1: one node per lane; scale/shift are already per-lane.

    x_ref: (TR, 128) activations, s_ref/t_ref: (TR, 128) f32, out_ref: (TR, 128).
    """
    x = x_ref[...].astype(jnp.float32)
    out_ref[...] = (x * s_ref[...] + t_ref[...]).astype(out_ref.dtype)


def _scale_shift_kernel(expand_ref, x_ref, s_ref, t_ref, out_ref):
    """F > 1: expand per-node scalars (TR, npr) to per-lane (TR, 128).

    expand_ref: (npr, 128) 0/1 selector — constant input, block index never
    changes, so Pallas DMAs it once and keeps it resident in VMEM.  The MXU
    slot is otherwise idle, so the selector matmul is free filler and the
    kernel stays HBM-bandwidth-bound.  Exactly one 0/1 term contributes per
    output lane; verified against the f32 reference at 1e-5 on hardware.
    """
    x = x_ref[...].astype(jnp.float32)
    e = expand_ref[...]                                   # (npr, 128) f32
    s_lane = jnp.dot(s_ref[...], e, preferred_element_type=jnp.float32)
    t_lane = jnp.dot(t_ref[...], e, preferred_element_type=jnp.float32)
    out_ref[...] = (x * s_lane + t_lane).astype(out_ref.dtype)


def scale_shift(output, z, scale_weight=None, shift_weight=None, *,
                tile_rows=1024, min_pallas_elements=16384, use_pallas=None):
    """Pallas ScaleShift forward.

    output:       [N, F] activations.
    z:            [N] int atomic numbers, 0 <= z < 119.
    scale_weight: [119, 1] or None (-> ones, scale disabled).
    shift_weight: [119, 1] or None (-> zeros, shift disabled).
    use_pallas:   None -> auto (size-based); True/False to force a path.
    """
    n, feat = output.shape
    z = z.reshape(-1).astype(jnp.int32)

    # One fused [119, 2] table -> a single per-node gather (instead of two
    # separate [119]-gathers).  NOTE: JAX clamps out-of-range indices, so
    # z >= 119 reads row 118 instead of erroring — validate z upstream.
    s_col = (jnp.ones((NUM_ELEMENTS, 1), jnp.float32) if scale_weight is None
             else scale_weight.astype(jnp.float32).reshape(-1, 1))
    t_col = (jnp.zeros((NUM_ELEMENTS, 1), jnp.float32) if shift_weight is None
             else shift_weight.astype(jnp.float32).reshape(-1, 1))
    st_tab = jnp.concatenate([s_col, t_col], axis=1)              # [119, 2]
    st = st_tab[z]                                                # [N, 2]

    if use_pallas is None:
        use_pallas = (output.size >= min_pallas_elements) and (128 % feat == 0)
    if (not use_pallas) or (128 % feat != 0):
        # Small-N fast path / unsupported feature width: a single fused XLA
        # elementwise map is strictly faster than pallas_call + packing here.
        # TODO(synk): generalize the lane packing to feature widths that do
        # not divide 128 so they can also take the Pallas path.
        res = output.astype(jnp.float32) * st[:, :1] + st[:, 1:]
        return res.astype(output.dtype)

    npr = 128 // feat                              # nodes per 128-lane row
    sub = 16 if output.dtype == jnp.bfloat16 else 8

    # ---- lane-dense packing: [N, F] -> [rows_pad, 128], npr nodes per row ----
    # Pad the node count only up to a sublane-aligned row count (bounded by
    # sub*npr nodes); the grid's last block may be ragged.
    rows = pl.cdiv(n, npr)
    rows_pad = _round_up(rows, sub)
    n_pad = rows_pad * npr

    # Tile from a target step count: >= 4 steps when rows permit (keeps both
    # v7x TensorCores busy with >= 2 pipelined steps each; harmless elsewhere),
    # blocks capped at `tile_rows` rows to amortize the ~0.35 us/step overhead.
    if rows_pad >= 4 * sub:
        min_steps = 4
    elif rows_pad >= 2 * sub:
        min_steps = 2
    else:
        min_steps = 1
    g = max(min_steps, pl.cdiv(rows_pad, tile_rows))
    tr = _round_up(pl.cdiv(rows_pad, g), sub)
    grid = (pl.cdiv(rows_pad, tr),)

    pad = n_pad - n
    x_p = jnp.pad(output, ((0, pad), (0, 0))) if pad else output
    # Padded nodes get scale = shift = 0 -> padded output entries are exactly
    # 0 and are sliced away below (never observed by the caller).
    st_p = jnp.pad(st, ((0, pad), (0, 0))) if pad else st
    x_packed = x_p.reshape(rows_pad, 128)
    s_packed = st_p[:, 0].reshape(rows_pad, npr)
    t_packed = st_p[:, 1].reshape(rows_pad, npr)

    x_spec = pl.BlockSpec((tr, 128), lambda i: (i, 0))
    side_spec = pl.BlockSpec((tr, npr), lambda i: (i, 0))
    out_spec = pl.BlockSpec((tr, 128), lambda i: (i, 0))

    if feat == 1:
        kernel = _scale_shift_kernel_f1
        in_specs = [x_spec, side_spec, side_spec]
        args = (x_packed, s_packed, t_packed)
    else:
        # 0/1 lane selector: lane j belongs to node j // feat.  Built once in
        # the wrapper (<= 64 KiB) and resident across the whole grid.
        col = lax.broadcasted_iota(jnp.int32, (npr, 128), 1)
        row = lax.broadcasted_iota(jnp.int32, (npr, 128), 0)
        expand = (col // feat == row).astype(jnp.float32)
        kernel = _scale_shift_kernel
        in_specs = [pl.BlockSpec((npr, 128), lambda i: (0, 0)),
                    x_spec, side_spec, side_spec]
        args = (expand, x_packed, s_packed, t_packed)

    out_packed = pl.pallas_call(
        kernel,
        out_shape=jax.ShapeDtypeStruct((rows_pad, 128), output.dtype),
        grid=grid,
        in_specs=in_specs,
        out_specs=out_spec,
        compiler_params=pltpu.CompilerParams(
            dimension_semantics=("parallel",)),
    )(*args)

    out = out_packed.reshape(n_pad, feat)
    return out if pad == 0 else out[:n]


if __name__ == "__main__":
    key = jax.random.PRNGKey(0)
    k_x, k_z, k_s, k_t, k_x1, k_z1, k_x2, k_z2 = jax.random.split(key, 8)

    # Deterministic tables (as-if set via set_scale / set_shift) so the op is
    # non-trivial.
    scale_weight = jax.random.normal(k_s, (NUM_ELEMENTS, 1), dtype=jnp.float32)
    shift_weight = jax.random.normal(k_t, (NUM_ELEMENTS, 1), dtype=jnp.float32)

    def ref_fn(x, z):
        return x * scale_weight[z] + shift_weight[z]

    # Case 1: Pallas path, F=8 — exercises lane packing, node-count padding,
    # a 4-step grid, and a ragged final block.
    N, F = 1601, 8
    x = jax.random.normal(k_x, (N, F), dtype=jnp.float32)
    z = jax.random.randint(k_z, (N,), 0, NUM_ELEMENTS, dtype=jnp.int32)
    out = jax.block_until_ready(
        scale_shift(x, z, scale_weight, shift_weight, use_pallas=True))
    assert out.shape == x.shape and out.dtype == x.dtype
    assert jnp.allclose(out, ref_fn(x, z), atol=1e-5, rtol=1e-5)

    # Case 2: Pallas path, F=1 (the module's typical per-atom-scalar case).
    N1, F1 = 1000, 1
    x1 = jax.random.normal(k_x1, (N1, F1), dtype=jnp.float32)
    z1 = jax.random.randint(k_z1, (N1,), 0, NUM_ELEMENTS, dtype=jnp.int32)
    out1 = jax.block_until_ready(
        scale_shift(x1, z1, scale_weight, shift_weight, use_pallas=True))
    assert out1.shape == x1.shape and out1.dtype == x1.dtype
    assert jnp.allclose(out1, ref_fn(x1, z1), atol=1e-5, rtol=1e-5)

    # Case 3: auto small-N fast path (pure fused XLA elementwise), shift=None.
    N2, F2 = 300, 4
    x2 = jax.random.normal(k_x2, (N2, F2), dtype=jnp.float32)
    z2 = jax.random.randint(k_z2, (N2,), 0, NUM_ELEMENTS, dtype=jnp.int32)
    out2 = jax.block_until_ready(scale_shift(x2, z2, scale_weight, None))
    assert jnp.allclose(out2, x2 * scale_weight[z2], atol=1e-5, rtol=1e-5)

    # Case 4: feature width that does not divide 128 -> JAX fallback path.
    x3 = jax.random.normal(k_x2, (64, 3), dtype=jnp.float32)
    z3 = jax.random.randint(k_z2, (64,), 0, NUM_ELEMENTS, dtype=jnp.int32)
    out3 = jax.block_until_ready(scale_shift(x3, z3, scale_weight, shift_weight))
    assert jnp.allclose(out3, ref_fn(x3, z3), atol=1e-5, rtol=1e-5)

    print("KERNEL_OK")
</pallas_src>

<mosaic_0001>
module attributes {stable_mosaic.version = 11 : i64} {
  func.func @_scale_shift_kernel(%arg0: i32, %arg1: memref<16x128xf32, #tpu.memory_space<vmem>>, %arg2: memref<32x128xf32, #tpu.memory_space<vmem>>, %arg3: memref<32x16xf32, #tpu.memory_space<vmem>>, %arg4: memref<32x16xf32, #tpu.memory_space<vmem>>, %arg5: memref<32x128xf32, #tpu.memory_space<vmem>>) attributes {dimension_semantics = [#tpu.dimension_semantics<parallel>], iteration_bounds = array<i64: 4>, scalar_prefetch = 0 : i64, scratch_operands = 0 : i64, tpu.core_type = #tpu.core_type<tc>, window_params = [{pipeline_mode = #tpu.pipeline_mode<synchronous>, transform_indices = @transform_0, window_bounds = array<i64: 16, 128>}, {transform_indices = @transform_1, window_bounds = array<i64: 32, 128>}, {transform_indices = @transform_2, window_bounds = array<i64: 32, 16>}, {transform_indices = @transform_3, window_bounds = array<i64: 32, 16>}, {transform_indices = @transform_4, window_bounds = array<i64: 32, 128>}]} {
    %c0 = arith.constant 0 : index
    %c0_0 = arith.constant 0 : index
    %0 = vector.load %arg2[%c0, %c0_0] : memref<32x128xf32, #tpu.memory_space<vmem>>, vector<32x128xf32>
    %c0_1 = arith.constant 0 : index
    %c0_2 = arith.constant 0 : index
    %1 = vector.load %arg1[%c0_1, %c0_2] : memref<16x128xf32, #tpu.memory_space<vmem>>, vector<16x128xf32>
    %c0_3 = arith.constant 0 : index
    %c0_4 = arith.constant 0 : index
    %2 = vector.load %arg3[%c0_3, %c0_4] : memref<32x16xf32, #tpu.memory_space<vmem>>, vector<32x16xf32>
    %cst = arith.constant dense<0.000000e+00> : vector<32x128xf32>
    %3 = tpu.matmul %2, %1, %cst {dimension_numbers = #tpu.dot_dimension_numbers<[1], [0], [0], [1], [0, 0, 1, 1], [], []>} : vector<32x16xf32>, vector<16x128xf32>, vector<32x128xf32> -> vector<32x128xf32>
    %c0_5 = arith.constant 0 : index
    %c0_6 = arith.constant 0 : index
    %4 = vector.load %arg4[%c0_5, %c0_6] : memref<32x16xf32, #tpu.memory_space<vmem>>, vector<32x16xf32>
    %cst_7 = arith.constant dense<0.000000e+00> : vector<32x128xf32>
    %5 = tpu.matmul %4, %1, %cst_7 {dimension_numbers = #tpu.dot_dimension_numbers<[1], [0], [0], [1], [0, 0, 1, 1], [], []>} : vector<32x16xf32>, vector<16x128xf32>, vector<32x128xf32> -> vector<32x128xf32>
    %6 = arith.mulf %0, %3 : vector<32x128xf32>
    %7 = arith.addf %6, %5 : vector<32x128xf32>
    %c0_8 = arith.constant 0 : index
    %c0_9 = arith.constant 0 : index
    %8 = vector.load %arg5[%c0_8, %c0_9] : memref<32x128xf32, #tpu.memory_space<vmem>>, vector<32x128xf32>
    tpu.vector_store %arg5[%c0_8, %c0_9], %7 {strides = array<i32>} : memref<32x128xf32, #tpu.memory_space<vmem>>, vector<32x128xf32>,
    return
  }
  func.func @transform_0(%arg0: i32) -> (i32, i32) {
    %c0_i32 = arith.constant 0 : i32
    %c0_i32_0 = arith.constant 0 : i32
    %c0_i32_1 = arith.constant 0 : i32
    return %c0_i32, %c0_i32_0 : i32, i32
  }
  func.func @transform_1(%arg0: i32) -> (i32, i32) {
    %c0_i32 = arith.constant 0 : i32
    %c0_i32_0 = arith.constant 0 : i32
    return %arg0, %c0_i32 : i32, i32
  }
  func.func @transform_2(%arg0: i32) -> (i32, i32) {
    %c0_i32 = arith.constant 0 : i32
    %c0_i32_0 = arith.constant 0 : i32
    return %arg0, %c0_i32 : i32, i32
  }
  func.func @transform_3(%arg0: i32) -> (i32, i32) {
    %c0_i32 = arith.constant 0 : i32
    %c0_i32_0 = arith.constant 0 : i32
    return %arg0, %c0_i32 : i32, i32
  }
  func.func @transform_4(%arg0: i32) -> (i32, i32) {
    %c0_i32 = arith.constant 0 : i32
    %c0_i32_0 = arith.constant 0 : i32
    return %arg0, %c0_i32 : i32, i32
  }
}

</mosaic_0001>

<llo_original>
// kernel: tpu_custom_call.1
$region0: #{tpu_custom_call.1}
  #allocation0 [shape = 'u32[]', space=smem, size = 0x4, offset = 0x4, fixed_abs, tag = 'smem constant byte address 0x4 - core index']
  #allocation1 [shape = 'u32[144,128]{1,0:T(1,128)}', space=vmem, size = 0x12000, scoped, tag = 'internal scratch']
  %s0 = inlined_call_operand.vmem [shape: f32[16,128], index: 0, kind: input, shape index: {}]
  %s1 = inlined_call_operand.vmem [shape: f32[104,128], index: 1, kind: input, shape index: {}]
  %s2 = inlined_call_operand.vmem [shape: f32[104,16], index: 2, kind: input, shape index: {}]
  %s3 = inlined_call_operand.vmem [shape: f32[104,16], index: 3, kind: input, shape index: {}]
  %s4 = inlined_call_operand.hbm [shape: f32[104,128], index: 4, kind: output, shape index: {}]
  %s5 = sld [smem:[#allocation0]]
  $region49: #{tpu_custom_call.1} parent=0
    _
  %s7 = ssub.s32 1, %s5
  %s8 = scalar_select 0, %s7, %s5
  $region1: #{tpu_custom_call.1} parent=0
    #allocation2 [shape = 'u8[32768]{0}', space=vmem, size = 0x8000, scoped, tag = 'output window, operand 0']
    #allocation3 [shape = 's32[2]{0}', space=sflag, size = 0x8, scoped, tag = 'scoped memory for tpu_custom_call.1']
    %9 = vsyncpa [#allocation3], 0
    %s10 = scalar_lea.sflag [#allocation3], 1
    %11 = vsyncpa %s10, 0
    loop: start=0, step=1, limit=6
    $region2: #{tpu_custom_call.1} parent=1 // loop_pre_header
      _
    $region3: #{tpu_custom_call.1} parent=1 // loop_header
      %s13 = sphi 0, %s17
      %p14 = scmp.ge.s32.totalorder %s13, 6
      %s21 = sphi 0, %s21
      %s23 = sphi 0, %s21
      %s24 = sphi 0, %s23
      %s38 = sphi 0, %s24
      %s44 = sphi 0, %s46
      %s47 = sphi 0, %s44
      %s48 = sphi 0, %s47
      %s64 = sphi 0, %s48
      %s70 = sphi 0, %s72
      %s73 = sphi 0, %s70
      %s74 = sphi 0, %s73
      %s90 = sphi 0, %s74
      %s96 = sphi 0, %s98
      %s99 = sphi 0, %s96
      %s100 = sphi 0, %s99
      %s116 = sphi 0, %s100
      %s122 = sphi 0, %s124
      %s125 = sphi 0, %s122
      %s126 = sphi 0, %s125
      %s142 = sphi 0, %s126
    $region4: #{tpu_custom_call.1} parent=1 // loop_header_branch
      %16 = sbr.rel (%p14) target = $region8
    $region5: #{tpu_custom_call.1} parent=1 // loop_body
      %s18 = ssub.s32 %s13, 1
      %s19 = ssub.s32 %s13, 2
      %s20 = sadd.s32 %s13, 1
      %s22 = sadd.s32 %s21, 1
      %p25 = scmp.eq.s32.totalorder %s13, 3
      %p26 = scmp.ne.s32.totalorder %s21, %s23
      %p27 = scmp.eq.s32.totalorder %s13, 0
      %p28 = por %p26, %p27
      %p29 = scmp.ne.s32.totalorder %s21, %s23
      %p30 = scmp.eq.s32.totalorder %s18, 3
      %p31 = por %p29, %p30
      %p32 = scmp.ne.s32.totalorder %s23, %s24
      %p33 = scmp.eq.s32.totalorder %s18, 0
      %p34 = por %p32, %p33
      %p35 = scmp.ne.s32.totalorder %s23, %s24
      %p36 = scmp.eq.s32.totalorder %s19, 3
      %p37 = por %p35, %p36
      %p39 = scmp.ne.s32.totalorder %s24, %s38
      %p40 = scmp.eq.s32.totalorder %s19, 0
      %p41 = por %p39, %p40
      %s42 = ssub.s32 %s13, %s20
      %p43 = scmp.eq.s32.totalorder %s42, 0
      %s45 = sadd.s32 %s44, 1
      %s46 = scalar_select %p43, %s44, %s45
      %p49 = pneg %p43
      %p50 = scmp.eq.s32.totalorder %s13, 3
      %p51 = por %p49, %p50
      %p52 = scmp.ne.s32.totalorder %s44, %s47
      %p53 = scmp.eq.s32.totalorder %s13, 0
      %p54 = por %p52, %p53
      %p55 = scmp.ne.s32.totalorder %s44, %s47
      %p56 = scmp.eq.s32.totalorder %s18, 3
      %p57 = por %p55, %p56
      %p58 = scmp.ne.s32.totalorder %s47, %s48
      %p59 = scmp.eq.s32.totalorder %s18, 0
      %p60 = por %p58, %p59
      %p61 = scmp.ne.s32.totalorder %s47, %s48
      %p62 = scmp.eq.s32.totalorder %s19, 3
      %p63 = por %p61, %p62
      %p65 = scmp.ne.s32.totalorder %s48, %s64
      %p66 = scmp.eq.s32.totalorder %s19, 0
      %p67 = por %p65, %p66
      %s68 = ssub.s32 %s13, %s20
      %p69 = scmp.eq.s32.totalorder %s68, 0
      %s71 = sadd.s32 %s70, 1
      %s72 = scalar_select %p69, %s70, %s71
      %p75 = pneg %p69
      %p76 = scmp.eq.s32.totalorder %s13, 3
      %p77 = por %p75, %p76
      %p78 = scmp.ne.s32.totalorder %s70, %s73
      %p79 = scmp.eq.s32.totalorder %s13, 0
      %p80 = por %p78, %p79
      %p81 = scmp.ne.s32.totalorder %s70, %s73
      %p82 = scmp.eq.s32.totalorder %s18, 3
      %p83 = por %p81, %p82
      %p84 = scmp.ne.s32.totalorder %s73, %s74
      %p85 = scmp.eq.s32.totalorder %s18, 0
      %p86 = por %p84, %p85
      %p87 = scmp.ne.s32.totalorder %s73, %s74
      %p88 = scmp.eq.s32.totalorder %s19, 3
      %p89 = por %p87, %p88
      %p91 = scmp.ne.s32.totalorder %s74, %s90
      %p92 = scmp.eq.s32.totalorder %s19, 0
      %p93 = por %p91, %p92
      %s94 = ssub.s32 %s13, %s20
      %p95 = scmp.eq.s32.totalorder %s94, 0
      %s97 = sadd.s32 %s96, 1
      %s98 = scalar_select %p95, %s96, %s97
      %p101 = pneg %p95
      %p102 = scmp.eq.s32.totalorder %s13, 3
      %p103 = por %p101, %p102
      %p104 = scmp.ne.s32.totalorder %s96, %s99
      %p105 = scmp.eq.s32.totalorder %s13, 0
      %p106 = por %p104, %p105
      %p107 = scmp.ne.s32.totalorder %s96, %s99
      %p108 = scmp.eq.s32.totalorder %s18, 3
      %p109 = por %p107, %p108
      %p110 = scmp.ne.s32.totalorder %s99, %s100
      %p111 = scmp.eq.s32.totalorder %s18, 0
      %p112 = por %p110, %p111
      %p113 = scmp.ne.s32.totalorder %s99, %s100
      %p114 = scmp.eq.s32.totalorder %s19, 3
      %p115 = por %p113, %p114
      %p117 = scmp.ne.s32.totalorder %s100, %s116
      %p118 = scmp.eq.s32.totalorder %s19, 0
      %p119 = por %p117, %p118
      %s120 = ssub.s32 %s13, %s20
      %p121 = scmp.eq.s32.totalorder %s120, 0
      %s123 = sadd.s32 %s122, 1
      %s124 = scalar_select %p121, %s122, %s123
      %p127 = pneg %p121
      %p128 = scmp.eq.s32.totalorder %s13, 3
      %p129 = por %p127, %p128
      %p130 = scmp.ne.s32.totalorder %s122, %s125
      %p131 = scmp.eq.s32.totalorder %s13, 0
      %p132 = por %p130, %p131
      %p133 = scmp.ne.s32.totalorder %s122, %s125
      %p134 = scmp.eq.s32.totalorder %s18, 3
      %p135 = por %p133, %p134
      %p136 = scmp.ne.s32.totalorder %s125, %s126
      %p137 = scmp.eq.s32.totalorder %s18, 0
      %p138 = por %p136, %p137
      %p139 = scmp.ne.s32.totalorder %s125, %s126
      %p140 = scmp.eq.s32.totalorder %s19, 3
      %p141 = por %p139, %p140
      %p143 = scmp.ne.s32.totalorder %s126, %s142
      %p144 = scmp.eq.s32.totalorder %s19, 0
      %p145 = por %p143, %p144
      %p146 = scmp.le.s32.totalorder 1, %s13
      %p147 = scmp.lt.s32.totalorder %s13, 5
      %p148 = pnand %p146, %p147
      %p149 = pneg %p148
      // Predicated region
      $region9: #{tpu_custom_call.1} parent=5 // pred_check
        _
      $region10: #{tpu_custom_call.1} parent=5 // pred_check_branch
        %151 = sbr.rel (%p148) target = $region12
      $region11: #{tpu_custom_call.1} parent=5 // pred_region
        %s152 = ssub.s32 %s13, 1
        // Predicated region
        $region13: #{tpu_custom_call.1} parent=11 // pred_check
          %p153 = pneg %p34
        $region14: #{tpu_custom_call.1} parent=11 // pred_check_branch
          %155 = sbr.rel (%p153) target = $region16
        $region15: #{tpu_custom_call.1} parent=11 // pred_region
          _
        $region16: #{tpu_custom_call.1} parent=11 // pred_fallthru
          _
      $region12: #{tpu_custom_call.1} parent=5 // pred_fallthru
        _
      %p156 = scmp.lt.s32.totalorder %s13, 4
      // Predicated region
      $region17: #{tpu_custom_call.1} parent=5 // pred_check
        %p157 = pneg %p156
      $region18: #{tpu_custom_call.1} parent=5 // pred_check_branch
        %159 = sbr.rel (%p157) target = $region20
      $region19: #{tpu_custom_call.1} parent=5 // pred_region
        // Predicated region
        $region21: #{tpu_custom_call.1} parent=19 // pred_check
          %p160 = pneg %p54
        $region22: #{tpu_custom_call.1} parent=19 // pred_check_branch
          %162 = sbr.rel (%p160) target = $region24
        $region23: #{tpu_custom_call.1} parent=19 // pred_region
          %s163 = smul.u32 4, %s13
          %s164 = ssub.s32 13, %s163
          %p165 = scmp.lt.s32.totalorder %s164, 4
          %s166 = scalar_select %p165, %s164, 4
          %s167 = smul.u32 128, %s166
          %p168 = scmp.lt.s32.totalorder %s163, 12
          %s169 = scalar_select %p168, %s163, 12
          %s170 = smul.addr %s169, 8
          %s171 = scalar_lea.vmem %s1, %s170
          %s172 = smul.u32 4, %s13
          %s173 = ssub.s32 13, %s172
          %p174 = scmp.lt.s32.totalorder %s173, 4
          %s175 = scalar_select %p174, %s173, 4
          %s176 = smul.u32 128, %s175
        $region24: #{tpu_custom_call.1} parent=19 // pred_fallthru
          _
        // Predicated region
        $region25: #{tpu_custom_call.1} parent=19 // pred_check
          %p177 = pneg %p80
        $region26: #{tpu_custom_call.1} parent=19 // pred_check_branch
          %179 = sbr.rel (%p177) target = $region28
        $region27: #{tpu_custom_call.1} parent=19 // pred_region
          %s180 = smul.u32 4, %s13
          %s181 = ssub.s32 13, %s180
          %p182 = scmp.lt.s32.totalorder %s181, 4
          %s183 = scalar_select %p182, %s181, 4
          %s184 = smul.u32 128, %s183
          %p185 = scmp.lt.s32.totalorder %s180, 12
          %s186 = scalar_select %p185, %s180, 12
          %s187 = smul.addr %s186, 8
          %s188 = scalar_lea.vmem %s2, %s187
          %s189 = smul.u32 4, %s13
          %s190 = ssub.s32 13, %s189
          %p191 = scmp.lt.s32.totalorder %s190, 4
          %s192 = scalar_select %p191, %s190, 4
          %s193 = smul.u32 128, %s192
        $region28: #{tpu_custom_call.1} parent=19 // pred_fallthru
          _
        // Predicated region
        $region29: #{tpu_custom_call.1} parent=19 // pred_check
          %p194 = pneg %p106
        $region30: #{tpu_custom_call.1} parent=19 // pred_check_branch
          %196 = sbr.rel (%p194) target = $region32
        $region31: #{tpu_custom_call.1} parent=19 // pred_region
          %s197 = smul.u32 4, %s13
          %s198 = ssub.s32 13, %s197
          %p199 = scmp.lt.s32.totalorder %s198, 4
          %s200 = scalar_select %p199, %s198, 4
          %s201 = smul.u32 128, %s200
          %p202 = scmp.lt.s32.totalorder %s197, 12
          %s203 = scalar_select %p202, %s197, 12
          %s204 = smul.addr %s203, 8
          %s205 = scalar_lea.vmem %s3, %s204
          %s206 = smul.u32 4, %s13
          %s207 = ssub.s32 13, %s206
          %p208 = scmp.lt.s32.totalorder %s207, 4
          %s209 = scalar_select %p208, %s207, 4
          %s210 = smul.u32 128, %s209
        $region32: #{tpu_custom_call.1} parent=19 // pred_fallthru
          _
      $region20: #{tpu_custom_call.1} parent=5 // pred_fallthru
        _
      %p211 = scmp.le.s32.totalorder 1, %s13
      %p212 = scmp.lt.s32.totalorder %s13, 5
      %p213 = pnand %p211, %p212
      %p214 = pneg %p213
      // Predicated region
      $region33: #{tpu_custom_call.1} parent=5 // pred_check
        _
      $region34: #{tpu_custom_call.1} parent=5 // pred_check_branch
        %216 = sbr.rel (%p213) target = $region36
      $region35: #{tpu_custom_call.1} parent=5 // pred_region
        %s217 = ssub.s32 %s13, 1
        %p218 = pneg %p34
        %p219 = pneg %p31
        %s220 = smul.u32 4, %s18
        %s221 = ssub.s32 13, %s220
        %p222 = scmp.lt.s32.totalorder %s221, 4
        %s223 = scalar_select %p222, %s221, 4
        %s224 = smul.u32 128, %s223
        %p225 = scmp.lt.s32.totalorder %s220, 12
        %s226 = scalar_select %p225, %s220, 12
        %s227 = smul.addr %s226, 8
        %s228 = scalar_lea.vmem %s1, %s227
        %p229 = pneg %p60
        %p230 = pneg %p57
        %s231 = smul.u32 4, %s18
        %s232 = ssub.s32 13, %s231
        %p233 = scmp.lt.s32.totalorder %s232, 4
        %s234 = scalar_select %p233, %s232, 4
        %s235 = smul.u32 128, %s234
        %p236 = scmp.lt.s32.totalorder %s231, 12
        %s237 = scalar_select %p236, %s231, 12
        %s238 = smul.addr %s237, 8
        %s239 = scalar_lea.vmem %s2, %s238
        %p240 = pneg %p86
        %p241 = pneg %p83
        %s242 = smul.u32 4, %s18
        %s243 = ssub.s32 13, %s242
        %p244 = scmp.lt.s32.totalorder %s243, 4
        %s245 = scalar_select %p244, %s243, 4
        %s246 = smul.u32 128, %s245
        %p247 = scmp.lt.s32.totalorder %s242, 12
        %s248 = scalar_select %p247, %s242, 12
        %s249 = smul.addr %s248, 8
        %s250 = scalar_lea.vmem %s3, %s249
        %p251 = pneg %p112
        %p252 = pneg %p109
        %p253 = pneg %p138
        %p254 = pneg %p135
        %s255 = sand.u32 %s125, 1
        %s256 = scalar_lea.sflag [#allocation3], %s255
        %s257 = sand.u32 %s125, 1
        %s258 = smul.addr %s257, 32
        %s259 = scalar_lea.vmem [#allocation2], %s258
        %s260 = smul.u32 4, %s18
        %s261 = ssub.s32 13, %s260
        %p262 = scmp.lt.s32.totalorder %s261, 4
        %s263 = scalar_select %p262, %s261, 4
        %s264 = smul.u32 128, %s263
        %p265 = scmp.lt.s32.totalorder %s260, 12
        %s266 = scalar_select %p265, %s260, 12
        %s267 = smul.addr %s266, 8
        %s268 = scalar_lea.vmem %s1, %s267
        %s269 = smul.u32 4, %s18
        %s270 = ssub.s32 13, %s269
        %p271 = scmp.lt.s32.totalorder %s270, 4
        %s272 = scalar_select %p271, %s270, 4
        %s273 = smul.u32 128, %s272
        %s274 = smul.u32 4, %s18
        %s275 = ssub.s32 13, %s274
        %p276 = scmp.lt.s32.totalorder %s275, 4
        %s277 = scalar_select %p276, %s275, 4
        %s278 = smul.u32 128, %s277
        %p279 = scmp.lt.s32.totalorder %s274, 12
        %s280 = scalar_select %p279, %s274, 12
        %s281 = smul.addr %s280, 8
        %s282 = scalar_lea.vmem %s2, %s281
        %s283 = smul.u32 4, %s18
        %s284 = ssub.s32 13, %s283
        %p285 = scmp.lt.s32.totalorder %s284, 4
        %s286 = scalar_select %p285, %s284, 4
        %s287 = smul.u32 128, %s286
        %s288 = smul.u32 4, %s18
        %s289 = ssub.s32 13, %s288
        %p290 = scmp.lt.s32.totalorder %s289, 4
        %s291 = scalar_select %p290, %s289, 4
        %s292 = smul.u32 128, %s291
        %p293 = scmp.lt.s32.totalorder %s288, 12
        %s294 = scalar_select %p293, %s288, 12
        %s295 = smul.addr %s294, 8
        %s296 = scalar_lea.vmem %s3, %s295
        %s297 = smul.u32 4, %s18
        %s298 = ssub.s32 13, %s297
        %p299 = scmp.lt.s32.totalorder %s298, 4
        %s300 = scalar_select %p299, %s298, 4
        %s301 = smul.u32 128, %s300
        %s302 = smul.u32 4, %s18
        %s303 = ssub.s32 13, %s302
        %p304 = scmp.lt.s32.totalorder %s303, 4
        %s305 = scalar_select %p304, %s303, 4
        %s306 = smul.u32 128, %s305
        %v307 = vld [vmem:[%s268] sm:$0xff]
        %v308 = vld [vmem:[%s268 + $0x8] sm:$0xff]
        %v309 = vld [vmem:[%s268 + $0x10] sm:$0xff]
        %v310 = vld [vmem:[%s268 + $0x18] sm:$0xff]
        %v311 = vld [vmem:[%s0] sm:$0xff]
        %v312 = vld [vmem:[%s0 + $0x8] sm:$0xff]
        %v313 = vld [vmem:[%s282] sm:$0xff]
        %v314 = vld [vmem:[%s282 + $0x8] sm:$0xff]
        %v315 = vld [vmem:[%s282 + $0x10] sm:$0xff]
        %v316 = vld [vmem:[%s282 + $0x18] sm:$0xff]
        %vm317 = vcmask 130048
        %v319 = vsel %vm317, %v313, 0
        %v322 = vsel %vm317, %v314, 0
        %v325 = vsel %vm317, %v315, 0
        %v328 = vsel %vm317, %v316, 0
        %330 = vmatprep.subr.mxu0 0.0
        %331 = vmatpush1.msra.mxu0 %v311
        %332 = vmatprep.subr.mxu0 0.0
        %333 = vmatpush1.msra.mxu0 %v312
        %334 = vmatprep.subr.mxu0 0.0
        %335 = vmatpush1.msra.mxu0 0.0
        %336 = vmatprep.subr.mxu0 0.0
        %337 = vmatpush1.msra.mxu0 0.0
        %338 = vmatprep.subr.mxu0 0.0
        %339 = vmatpush1.msra.mxu0 0.0
        %340 = vmatprep.subr.mxu0 0.0
        %341 = vmatpush1.msra.mxu0 0.0
        %342 = vmatprep.subr.mxu0 0.0
        %343 = vmatpush1.msra.mxu0 0.0
        %344 = vmatprep.subr.mxu0 0.0
        %345 = vmatpush1.msra.mxu0 0.0
        %346 = vmatprep.subr.mxu0 0.0
        %347 = vmatpush1.msra.mxu0 0.0
        %348 = vmatprep.subr.mxu0 0.0
        %349 = vmatpush1.msra.mxu0 0.0
        %350 = vmatprep.subr.mxu0 0.0
        %351 = vmatpush1.msra.mxu0 0.0
        %352 = vmatprep.subr.mxu0 0.0
        %353 = vmatpush1.msra.mxu0 0.0
        %354 = vmatprep.subr.mxu0 0.0
        %355 = vmatpush1.msra.mxu0 0.0
        %356 = vmatprep.subr.mxu0 0.0
        %357 = vmatpush1.msra.mxu0 0.0
        %358 = vmatprep.subr.mxu0 0.0
        %359 = vmatpush1.msra.mxu0 0.0
        %360 = vmatprep.subr.mxu0 0.0
        %361 = vmatpush1.msra.mxu0 0.0
        %362 = vmatprep.subr.mxu0 0.0
        %363 = vmatpush1.msra.mxu0 0.0
        %364 = vmatprep.subr.mxu0 0.0
        %365 = vmatpush1.msra.mxu0 0.0
        %366 = vmatprep.subr.mxu0 0.0
        %367 = vmatpush1.msra.mxu0 0.0
        %368 = vmatprep.subr.mxu0 0.0
        %369 = vmatpush1.msra.mxu0 0.0
        %370 = vmatprep.subr.mxu0 0.0
        %371 = vmatpush1.msra.mxu0 0.0
        %372 = vmatprep.subr.mxu0 0.0
        %373 = vmatpush1.msra.mxu0 0.0
        %374 = vmatprep.subr.mxu0 0.0
        %375 = vmatpush1.msra.mxu0 0.0
        %376 = vmatprep.subr.mxu0 0.0
        %377 = vmatpush1.msra.mxu0 0.0
        %378 = vmatprep.subr.mxu0 0.0
        %379 = vmatpush1.msra.mxu0 0.0
        %380 = vmatprep.subr.mxu0 0.0
        %381 = vmatpush1.msra.mxu0 0.0
        %382 = vmatprep.subr.mxu0 0.0
        %383 = vmatpush1.msra.mxu0 0.0
        %384 = vmatprep.subr.mxu0 0.0
        %385 = vmatpush1.msra.mxu0 0.0
        %386 = vmatprep.subr.mxu0 0.0
        %387 = vmatpush1.msra.mxu0 0.0
        %388 = vmatprep.subr.mxu0 0.0
        %389 = vmatpush1.msra.mxu0 0.0
        %390 = vmatprep.subr.mxu0 0.0
        %391 = vmatpush1.msra.mxu0 0.0
        %392 = vmatprep.subr.mxu0 0.0
        %393 = vmatpush1.msra.mxu0 0.0
        %394 = vmatprep.mubr.f32.mxu0 0.0
        %395 = vmatmul.mubr.f32.gmra.mrb[0].mxu0 %v319
        %v396 = vpop.f32.mrb[0].mxu0
        %v397 = vadd.f32 0.0, %v396
        %v398 = vpop.f32.mrb[0].mxu0
        %399 = vmatprep.mubr.f32.mxu0 0.0
        %400 = vmatmul.mubr.f32.gmra.mrb[0].mxu0 %v322
        %v401 = vpop.f32.mrb[0].mxu0
        %v402 = vadd.f32 0.0, %v401
        %v403 = vpop.f32.mrb[0].mxu0
        %404 = vmatprep.mubr.f32.mxu0 0.0
        %405 = vmatmul.mubr.f32.gmra.mrb[0].mxu0 %v325
        %v406 = vpop.f32.mrb[0].mxu0
        %v407 = vadd.f32 0.0, %v406
        %v408 = vpop.f32.mrb[0].mxu0
        %409 = vmatprep.mubr.f32.mxu0 0.0
        %410 = vmatmul.mubr.f32.gmra.mrb[0].mxu0 %v328
        %v411 = vpop.f32.mrb[0].mxu0
        %v412 = vadd.f32 0.0, %v411
        %v413 = vpop.f32.mrb[0].mxu0
        %414 = vdwg.mxu0
        %v415 = vld [vmem:[%s296] sm:$0xff]
        %v416 = vld [vmem:[%s296 + $0x8] sm:$0xff]
        %v417 = vld [vmem:[%s296 + $0x10] sm:$0xff]
        %v418 = vld [vmem:[%s296 + $0x18] sm:$0xff]
        %v420 = vsel %vm317, %v415, 0
        %v423 = vsel %vm317, %v416, 0
        %v426 = vsel %vm317, %v417, 0
        %v429 = vsel %vm317, %v418, 0
        %431 = vmatprep.subr.mxu0 0.0
        %432 = vmatpush1.msra.mxu0 %v311
        %433 = vmatprep.subr.mxu0 0.0
        %434 = vmatpush1.msra.mxu0 %v312
        %435 = vmatprep.subr.mxu0 0.0
        %436 = vmatpush1.msra.mxu0 0.0
        %437 = vmatprep.subr.mxu0 0.0
        %438 = vmatpush1.msra.mxu0 0.0
        %439 = vmatprep.subr.mxu0 0.0
        %440 = vmatpush1.msra.mxu0 0.0
        %441 = vmatprep.subr.mxu0 0.0
        %442 = vmatpush1.msra.mxu0 0.0
        %443 = vmatprep.subr.mxu0 0.0
        %444 = vmatpush1.msra.mxu0 0.0
        %445 = vmatprep.subr.mxu0 0.0
        %446 = vmatpush1.msra.mxu0 0.0
        %447 = vmatprep.subr.mxu0 0.0
        %448 = vmatpush1.msra.mxu0 0.0
        %449 = vmatprep.subr.mxu0 0.0
        %450 = vmatpush1.msra.mxu0 0.0
        %451 = vmatprep.subr.mxu0 0.0
        %452 = vmatpush1.msra.mxu0 0.0
        %453 = vmatprep.subr.mxu0 0.0
        %454 = vmatpush1.msra.mxu0 0.0
        %455 = vmatprep.subr.mxu0 0.0
        %456 = vmatpush1.msra.mxu0 0.0
        %457 = vmatprep.subr.mxu0 0.0
        %458 = vmatpush1.msra.mxu0 0.0
        %459 = vmatprep.subr.mxu0 0.0
        %460 = vmatpush1.msra.mxu0 0.0
        %461 = vmatprep.subr.mxu0 0.0
        %462 = vmatpush1.msra.mxu0 0.0
        %463 = vmatprep.subr.mxu0 0.0
        %464 = vmatpush1.msra.mxu0 0.0
        %465 = vmatprep.subr.mxu0 0.0
        %466 = vmatpush1.msra.mxu0 0.0
        %467 = vmatprep.subr.mxu0 0.0
        %468 = vmatpush1.msra.mxu0 0.0
        %469 = vmatprep.subr.mxu0 0.0
        %470 = vmatpush1.msra.mxu0 0.0
        %471 = vmatprep.subr.mxu0 0.0
        %472 = vmatpush1.msra.mxu0 0.0
        %473 = vmatprep.subr.mxu0 0.0
        %474 = vmatpush1.msra.mxu0 0.0
        %475 = vmatprep.subr.mxu0 0.0
        %476 = vmatpush1.msra.mxu0 0.0
        %477 = vmatprep.subr.mxu0 0.0
        %478 = vmatpush1.msra.mxu0 0.0
        %479 = vmatprep.subr.mxu0 0.0
        %480 = vmatpush1.msra.mxu0 0.0
        %481 = vmatprep.subr.mxu0 0.0
        %482 = vmatpush1.msra.mxu0 0.0
        %483 = vmatprep.subr.mxu0 0.0
        %484 = vmatpush1.msra.mxu0 0.0
        %485 = vmatprep.subr.mxu0 0.0
        %486 = vmatpush1.msra.mxu0 0.0
        %487 = vmatprep.subr.mxu0 0.0
        %488 = vmatpush1.msra.mxu0 0.0
        %489 = vmatprep.subr.mxu0 0.0
        %490 = vmatpush1.msra.mxu0 0.0
        %491 = vmatprep.subr.mxu0 0.0
        %492 = vmatpush1.msra.mxu0 0.0
        %493 = vmatprep.subr.mxu0 0.0
        %494 = vmatpush1.msra.mxu0 0.0
        %495 = vmatprep.mubr.f32.mxu0 0.0
        %496 = vmatmul.mubr.f32.gmra.mrb[0].mxu0 %v420
        %v497 = vpop.f32.mrb[0].mxu0
        %v498 = vadd.f32 0.0, %v497
        %v499 = vpop.f32.mrb[0].mxu0
        %500 = vmatprep.mubr.f32.mxu0 0.0
        %501 = vmatmul.mubr.f32.gmra.mrb[0].mxu0 %v423
        %v502 = vpop.f32.mrb[0].mxu0
        %v503 = vadd.f32 0.0, %v502
        %v504 = vpop.f32.mrb[0].mxu0
        %505 = vmatprep.mubr.f32.mxu0 0.0
        %506 = vmatmul.mubr.f32.gmra.mrb[0].mxu0 %v426
        %v507 = vpop.f32.mrb[0].mxu0
        %v508 = vadd.f32 0.0, %v507
        %v509 = vpop.f32.mrb[0].mxu0
        %510 = vmatprep.mubr.f32.mxu0 0.0
        %511 = vmatmul.mubr.f32.gmra.mrb[0].mxu0 %v429
        %v512 = vpop.f32.mrb[0].mxu0
        %v513 = vadd.f32 0.0, %v512
        %v514 = vpop.f32.mrb[0].mxu0
        %515 = vdwg.mxu0
        %v516 = vmul.f32 %v307, %v397
        %v517 = vmul.f32 %v308, %v402
        %v518 = vmul.f32 %v309, %v407
        %v519 = vmul.f32 %v310, %v412
        %v520 = vadd.f32 %v516, %v498
        %v521 = vadd.f32 %v517, %v503
        %v522 = vadd.f32 %v518, %v508
        %v523 = vadd.f32 %v519, %v513
        %524 = vst [vmem:[%s259] sm:$0xff] %v520
        %525 = vst [vmem:[%s259 + $0x8] sm:$0xff] %v521
        %526 = vst [vmem:[%s259 + $0x10] sm:$0xff] %v522
        %527 = vst [vmem:[%s259 + $0x18] sm:$0xff] %v523
        %s528 = sand.u32 %s125, 1
        %s529 = scalar_lea.sflag [#allocation3], %s528
        %s530 = sand.u32 %s125, 1
        %s531 = smul.addr %s530, 32
        %s532 = scalar_lea.vmem [#allocation2], %s531
        // Predicated region
        $region37: #{tpu_custom_call.1} parent=35 // pred_check
          %p533 = pneg %p135
        $region38: #{tpu_custom_call.1} parent=35 // pred_check_branch
          %535 = sbr.rel (%p533) target = $region40
        $region39: #{tpu_custom_call.1} parent=35 // pred_region
          %s536 = smul.u32 4, %s18
          %s537 = ssub.s32 13, %s536
          %p538 = scmp.lt.s32.totalorder %s537, 4
          %s539 = scalar_select %p538, %s537, 4
          %s540 = smul.u32 128, %s539
          %s542 = ssub.s32 512, %s540
          %543 = vsyncadd %s529, %s542
          %p544 = scmp.ne.s32.totalorder 0, %s540
          %s545 = smul.addr %s536, 128
          %s546 = scalar_lea.hbm %s4, %s545
          %s547 = smul.u32 8, %s539
          %s548 = sshll.u32 %s532, 4
          %s549 = int_to_ptr.vmem [resolvable:$true] %s548
          %s550 = sshll.u32 %s547, 4
          %554 = dma.vmem_to_hbm [thread:$0]  (%p544), %s549, %s550, %s546, %s529, 128, 128, 8
        $region40: #{tpu_custom_call.1} parent=35 // pred_fallthru
          _
      $region36: #{tpu_custom_call.1} parent=5 // pred_fallthru
        _
      %p555 = scmp.le.s32.totalorder 2, %s13
      // Predicated region
      $region41: #{tpu_custom_call.1} parent=5 // pred_check
        %p556 = pneg %p555
      $region42: #{tpu_custom_call.1} parent=5 // pred_check_branch
        %558 = sbr.rel (%p556) target = $region44
      $region43: #{tpu_custom_call.1} parent=5 // pred_region
        %s559 = ssub.s32 %s13, 2
        // Predicated region
        $region45: #{tpu_custom_call.1} parent=43 // pred_check
          %p560 = pneg %p141
        $region46: #{tpu_custom_call.1} parent=43 // pred_check_branch
          %562 = sbr.rel (%p560) target = $region48
        $region47: #{tpu_custom_call.1} parent=43 // pred_region
          %s563 = sand.u32 %s126, 1
          %s564 = scalar_lea.sflag [#allocation3], %s563
          %s565 = sand.u32 %s126, 1
          %s566 = smul.addr %s565, 32
          %s567 = scalar_lea.vmem [#allocation2], %s566
          %568 = dma.done %s564, 512
        $region48: #{tpu_custom_call.1} parent=43 // pred_fallthru
          _
      $region44: #{tpu_custom_call.1} parent=5 // pred_fallthru
        _
    $region6: #{tpu_custom_call.1} parent=1 // loop_footer
      %s17 = sadd.s32 1, %s13
    $region7: #{tpu_custom_call.1} parent=1 // loop_footer_branch
      %12 = sbr.rel target = $region3
    $region8: #{tpu_custom_call.1} parent=1 // loop_exit
      _
    %569 = vsyncpa [#allocation3], 1
    %s570 = scalar_lea.sflag [#allocation3], 1
    %571 = vsyncpa %s570, 1

</llo_original>
